<compile_context>
chip_gen: v6e
topology: v6e:2x2x1
jax: 0.10.0
libtpu: 0.0.40
codegen_flags: <defaults>
</compile_context>

<pallas_src>
import functools

import jax
import jax.numpy as jnp
from jax import lax
from jax.experimental import pallas as pl
from jax.experimental.pallas import tpu as pltpu


# --------------------------------------------------------------------------
# helpers
# --------------------------------------------------------------------------
SQRT_HALF = 0.7071067811865475
GELU_TANH_C = 0.7978845608028654            # sqrt(2/pi)


def _vmem_limit_bytes():
    """Generation-aware scoped-VMEM limit (v5e/v6e: 128 MiB phys, v7x: 64 MiB)."""
    try:
        cap = pltpu.get_tpu_info().vmem_capacity_bytes
    except Exception:
        return 40 * 1024 * 1024              # safe fallback on every generation
    if cap >= 100 * 1024 * 1024:
        return 96 * 1024 * 1024              # v5e / v6e
    return min(40 * 1024 * 1024, int(cap * 0.62))   # v7x


VMEM_LIMIT = _vmem_limit_bytes()


def _gelu_exact(x):
    # exact (erf) GELU, matching torch.nn.GELU() default (used in the stem).
    return 0.5 * x * (1.0 + lax.erf(x * SQRT_HALF))


def _gelu_tanh(x):
    # tanh-approx GELU: the transcendental runs on the otherwise-idle EUP slot
    # instead of a long VALU erf polynomial in the VPU-bound depthwise phase.
    # TODO(synk): ~1e-3 deviation from torch's exact-erf nn.GELU().
    return 0.5 * x * (1.0 + jnp.tanh(GELU_TANH_C * (x + 0.044715 * x * x * x)))


def _round_up(x, m):
    return (x + m - 1) // m * m


def _pick_strip(h):
    """Largest divisor of h that is <= 8 (depthwise H-strip height)."""
    for s in range(min(8, h), 0, -1):
        if h % s == 0:
            return s
    return 1


def fold_bn(bn, eps=1e-5):
    scale = bn["gamma"] * lax.rsqrt(bn["var"] + eps)
    shift = bn["beta"] - bn["mean"] * scale
    return scale, shift


# --------------------------------------------------------------------------
# kernel 1: tiled matmul + bias + GELU + BN  (patch-embed stem)
# --------------------------------------------------------------------------
def _matmul_gelu_bn_kernel(x_ref, w_ref, v_ref, o_ref, acc_ref):
    k = pl.program_id(2)

    @pl.when(k == 0)
    def _():
        acc_ref[...] = jnp.zeros_like(acc_ref)

    acc_ref[...] += jnp.dot(x_ref[...], w_ref[...],
                            preferred_element_type=jnp.float32)

    @pl.when(k == pl.num_programs(2) - 1)
    def _():
        v = v_ref[...]                       # (3, tn): bias / bn-scale / bn-shift
        y = _gelu_exact(acc_ref[...] + v[0])
        o_ref[...] = (y * v[1] + v[2]).astype(o_ref.dtype)


def matmul_gelu_bn(x, w, b, scale, shift, *, out_dtype=None,
                   tm=256, tn=256, tk=512, max_full_k=2048):
    """(M,K)@(K,N) + bias -> GELU -> BN, tiled over (M, N, K)."""
    m, k = x.shape
    n = w.shape[1]
    out_dtype = out_dtype or x.dtype

    tm = min(tm, _round_up(m, 8))
    tn = min(tn, _round_up(n, 128))
    # Avoid zero-padding K: full-extent K blocks are exempt from the 128 rule,
    # and for ConvMixer stems K = c_in * p * p is small (e.g. 147 for patch 7).
    if k <= max_full_k:
        tk, kp = k, k
    else:
        tk = min(tk, _round_up(k, 128))
        kp = _round_up(k, tk)
    mp, np_ = _round_up(m, tm), _round_up(n, tn)

    x_p = jnp.pad(x, ((0, mp - m), (0, kp - k)))
    w_p = jnp.pad(w, ((0, kp - k), (0, np_ - n)))
    # bias / scale / shift fused into one (3, N) block -> a single DMA stream.
    vec = jnp.stack([b, scale, shift]).astype(jnp.float32)
    vec = jnp.pad(vec, ((0, 0), (0, np_ - n)))

    out = pl.pallas_call(
        _matmul_gelu_bn_kernel,
        out_shape=jax.ShapeDtypeStruct((mp, np_), out_dtype),
        grid=(mp // tm, np_ // tn, kp // tk),
        in_specs=[
            pl.BlockSpec((tm, tk), lambda i, j, kq: (i, kq)),
            pl.BlockSpec((tk, tn), lambda i, j, kq: (kq, j)),
            pl.BlockSpec((3, tn), lambda i, j, kq: (0, j)),
        ],
        out_specs=pl.BlockSpec((tm, tn), lambda i, j, kq: (i, j)),
        scratch_shapes=[pltpu.VMEM((tm, tn), jnp.float32)],
        compiler_params=pltpu.CompilerParams(
            dimension_semantics=("parallel", "parallel", "arbitrary"),
            vmem_limit_bytes=VMEM_LIMIT),
    )(x_p, w_p, vec)
    return out[:m, :n]


# --------------------------------------------------------------------------
# kernel 2: fused group of ConvMixer blocks (per batch element)
#   [depthwise conv (same pad) + GELU + BN + residual + 1x1 conv + GELU + BN]
#   repeated `nblocks` times with the activation resident in VMEM throughout.
# --------------------------------------------------------------------------
def _mixer_group_kernel(x_ref, dww_ref, dwv_ref, pww_ref, pwv_ref, o_ref,
                        xpad_ref, y_ref, *, ksize, nblocks, strip_h):
    _, h, w, c = x_ref.shape
    p = ksize // 2
    hp, wp = h + 2 * p, w + 2 * p
    n_strips = h // strip_h

    # Zero only the p-wide halo border: the interior is fully overwritten every
    # grid step.  Deliberately NOT gated on pl.program_id(0) == 0 -- with a
    # 'parallel' batch axis the grid can be sharded across TensorCores and a
    # shard whose first step has program_id != 0 would never run the init.
    if p > 0:
        xpad_ref[:, 0:p, :, :] = jnp.zeros((1, p, wp, c), jnp.float32)
        xpad_ref[:, p + h:hp, :, :] = jnp.zeros((1, p, wp, c), jnp.float32)
        xpad_ref[:, p:p + h, 0:p, :] = jnp.zeros((1, h, p, c), jnp.float32)
        xpad_ref[:, p:p + h, p + w:wp, :] = jnp.zeros((1, h, p, c), jnp.float32)

    # Current activation -> padded interior (f32; stays f32 across the fused
    # blocks so there is no bf16 re-rounding at intra-group block boundaries).
    xpad_ref[:, p:p + h, p:p + w, :] = x_ref[...].astype(jnp.float32)

    for g in range(nblocks):
        dww = dww_ref[g]                      # (k*k, c) f32, loaded once per block
        dwb = dwv_ref[g, 0]
        dws = dwv_ref[g, 1]
        dwt = dwv_ref[g, 2]

        # ---- depthwise conv + GELU + BN + residual, strip-mined over H ----
        def strip_body(s, carry):
            r0 = pl.multiple_of(s * strip_h, strip_h)
            # ONE aligned full-width load of the padded strip (+ halo rows).
            xs = xpad_ref[:, pl.ds(r0, strip_h + 2 * p), :, :]   # (1,sh+2p,wp,c)
            acc = jnp.zeros((1, strip_h, w, c), jnp.float32)
            center = None
            for kx in range(ksize):
                # kx column shift done once per strip on the loaded value
                # (k relayouts/strip instead of k*k misaligned ref loads);
                # the ky shift is a free row offset.
                cols = xs[:, :, kx:kx + w, :]
                for ky in range(ksize):
                    acc = acc + cols[:, ky:ky + strip_h, :, :] * dww[ky * ksize + kx]
                if kx == p:
                    center = cols[:, p:p + strip_h, :, :]        # residual strip
            yv = _gelu_tanh(acc + dwb) * dws + dwt + center
            y_ref[:, pl.ds(r0, strip_h), :, :] = yv.astype(y_ref.dtype)
            return carry

        lax.fori_loop(0, n_strips, strip_body, 0)

        # ---- pointwise 1x1 conv (bf16 MXU matmul, f32 acc) + GELU + BN ----
        lhs = y_ref[...].reshape(h * w, c)                        # bf16
        zz = jnp.dot(lhs, pww_ref[g], preferred_element_type=jnp.float32)
        zz = _gelu_tanh(zz + pwv_ref[g, 0]) * pwv_ref[g, 1] + pwv_ref[g, 2]
        if g == nblocks - 1:
            o_ref[...] = zz.reshape(1, h, w, c).astype(o_ref.dtype)
        else:
            # feed the next fused block without leaving VMEM
            xpad_ref[:, p:p + h, p:p + w, :] = zz.reshape(1, h, w, c)


def mixer_block_group(x, dw_w, dw_vec, pw_w, pw_vec, *, ksize):
    """One fused pallas_call running dw_w.shape[0] consecutive ConvMixer blocks."""
    n, h, w, c = x.shape
    g = dw_w.shape[0]
    p = ksize // 2
    kk = ksize * ksize
    strip_h = _pick_strip(h)
    kernel = functools.partial(_mixer_group_kernel, ksize=ksize, nblocks=g,
                               strip_h=strip_h)
    return pl.pallas_call(
        kernel,
        out_shape=jax.ShapeDtypeStruct((n, h, w, c), x.dtype),
        grid=(n,),
        in_specs=[
            pl.BlockSpec((1, h, w, c), lambda b: (b, 0, 0, 0)),
            pl.BlockSpec((g, kk, c), lambda b: (0, 0, 0)),
            pl.BlockSpec((g, 3, c), lambda b: (0, 0, 0)),
            pl.BlockSpec((g, c, c), lambda b: (0, 0, 0)),
            pl.BlockSpec((g, 3, c), lambda b: (0, 0, 0)),
        ],
        out_specs=pl.BlockSpec((1, h, w, c), lambda b: (b, 0, 0, 0)),
        scratch_shapes=[
            pltpu.VMEM((1, h + 2 * p, w + 2 * p, c), jnp.float32),  # padded act
            pltpu.VMEM((1, h, w, c), jnp.bfloat16),                 # pointwise LHS
        ],
        compiler_params=pltpu.CompilerParams(
            dimension_semantics=("parallel",),      # v7x: batch across 2 TCs
            vmem_limit_bytes=VMEM_LIMIT),
    )(x, dw_w.astype(jnp.float32), dw_vec.astype(jnp.float32),
      pw_w.astype(jnp.bfloat16), pw_vec.astype(jnp.float32))


# --------------------------------------------------------------------------
# kernel 3a/3b: global average pool (per image) + lane-dense Linear head
# --------------------------------------------------------------------------
def _global_pool_kernel(x_ref, o_ref):
    _, h, w, c = x_ref.shape
    xf = x_ref[...].astype(jnp.float32)
    o_ref[...] = jnp.sum(jnp.sum(xf, axis=2), axis=1) * (1.0 / float(h * w))


def global_avg_pool(x):
    n, h, w, c = x.shape
    return pl.pallas_call(
        _global_pool_kernel,
        out_shape=jax.ShapeDtypeStruct((n, c), jnp.float32),
        grid=(n,),
        in_specs=[pl.BlockSpec((1, h, w, c), lambda b: (b, 0, 0, 0))],
        out_specs=pl.BlockSpec((1, c), lambda b: (b, 0)),
        compiler_params=pltpu.CompilerParams(
            dimension_semantics=("parallel",),
            vmem_limit_bytes=VMEM_LIMIT),
    )(x)


def _head_kernel(x_ref, w_ref, b_ref, o_ref):
    y = jnp.dot(x_ref[...], w_ref[...], preferred_element_type=jnp.float32)
    o_ref[...] = (y + b_ref[...]).astype(o_ref.dtype)


def linear_head(pooled, w, b):
    """(N, C) @ (C, ncls) + bias with ncls padded to a lane-dense 128 multiple."""
    n, c = pooled.shape
    ncls = w.shape[1]
    np_ = _round_up(ncls, 128)
    w_p = jnp.pad(w.astype(jnp.float32), ((0, 0), (0, np_ - ncls)))
    b_p = jnp.pad(b.astype(jnp.float32).reshape(1, ncls),
                  ((0, 0), (0, np_ - ncls)))
    out = pl.pallas_call(
        _head_kernel,
        out_shape=jax.ShapeDtypeStruct((n, np_), jnp.float32),
        grid=(1,),
        in_specs=[
            pl.BlockSpec((n, c), lambda i: (0, 0)),
            pl.BlockSpec((c, np_), lambda i: (0, 0)),
            pl.BlockSpec((1, np_), lambda i: (0, 0)),
        ],
        out_specs=pl.BlockSpec((n, np_), lambda i: (0, 0)),
        compiler_params=pltpu.CompilerParams(vmem_limit_bytes=VMEM_LIMIT),
    )(pooled, w_p, b_p)
    return out[:, :ncls]


# --------------------------------------------------------------------------
# ConvMixer forward (glue in plain JAX, compute in Pallas kernels)
# --------------------------------------------------------------------------
def convmixer_forward(x, params, *, patch_size, kernel_size, depth,
                      compute_dtype=jnp.bfloat16, blocks_per_call=2):
    assert kernel_size % 2 == 1, "padding='same' path assumes odd kernel_size"
    n, c_in, h, w = x.shape
    dim = params["stem_w"].shape[0]
    hp, wp = h // patch_size, w // patch_size

    # --- patch embedding: Conv2d(c_in, dim, k=p, stride=p) as im2col matmul ---
    patches = x.reshape(n, c_in, hp, patch_size, wp, patch_size)
    patches = patches.transpose(0, 2, 4, 1, 3, 5)
    patches = patches.reshape(n * hp * wp, c_in * patch_size * patch_size)
    w_stem = params["stem_w"].reshape(dim, -1).T               # (c_in*p*p, dim)
    s, t = fold_bn(params["stem_bn"])
    y = matmul_gelu_bn(patches.astype(compute_dtype),
                       w_stem.astype(compute_dtype),
                       params["stem_b"], s, t, out_dtype=compute_dtype)
    y = y.reshape(n, hp, wp, dim)                              # NHWC bf16 trunk

    # --- fused trunk: groups of `blocks_per_call` blocks per pallas_call ---
    kk = kernel_size * kernel_size
    d0 = 0
    while d0 < depth:
        g = min(blocks_per_call, depth - d0)
        blks = params["blocks"][d0:d0 + g]
        dw_w = jnp.stack([b["dw_w"].reshape(dim, kk).T for b in blks])
        dw_vec = jnp.stack([jnp.stack((b["dw_b"],) + fold_bn(b["dw_bn"]))
                            for b in blks])
        pw_w = jnp.stack([b["pw_w"].reshape(dim, dim).T for b in blks])
        pw_vec = jnp.stack([jnp.stack((b["pw_b"],) + fold_bn(b["pw_bn"]))
                            for b in blks])
        y = mixer_block_group(y, dw_w, dw_vec, pw_w, pw_vec, ksize=kernel_size)
        d0 += g

    # --- head: AdaptiveAvgPool2d((1,1)) + Flatten + Linear ---
    pooled = global_avg_pool(y)
    return linear_head(pooled, params["fc_w"].T, params["fc_b"])


# --------------------------------------------------------------------------
# deterministic parameter init (shapes follow the torch module __init__)
# --------------------------------------------------------------------------
def init_params(key, *, dim, depth, kernel_size, patch_size, num_classes,
                num_channels):
    keys = iter(jax.random.split(key, 256))

    def nrm(shape, s=0.1):
        return s * jax.random.normal(next(keys), shape, jnp.float32)

    def bn(c):
        return dict(
            gamma=1.0 + nrm((c,)),
            beta=nrm((c,)),
            mean=nrm((c,)),
            var=1.0 + 0.1 * jnp.abs(jax.random.normal(next(keys), (c,), jnp.float32)),
        )

    params = dict(
        stem_w=nrm((dim, num_channels, patch_size, patch_size)),
        stem_b=nrm((dim,)),
        stem_bn=bn(dim),
        blocks=[],
        fc_w=nrm((num_classes, dim)),
        fc_b=nrm((num_classes,)),
    )
    for _ in range(depth):
        params["blocks"].append(dict(
            dw_w=nrm((dim, 1, kernel_size, kernel_size)),
            dw_b=nrm((dim,)),
            dw_bn=bn(dim),
            pw_w=nrm((dim, dim, 1, 1)),
            pw_b=nrm((dim,)),
            pw_bn=bn(dim),
        ))
    return params


# --------------------------------------------------------------------------
if __name__ == "__main__":
    # small synthetic config (dim=128 keeps the channel/lane dim lane-dense)
    dim, depth, kernel_size, patch_size = 128, 2, 3, 4
    num_classes, num_channels = 16, 3
    batch, img = 2, 16

    key = jax.random.PRNGKey(0)
    kx, kp = jax.random.split(key)
    x = jax.random.normal(kx, (batch, num_channels, img, img), jnp.float32)  # NCHW
    params = init_params(kp, dim=dim, depth=depth, kernel_size=kernel_size,
                         patch_size=patch_size, num_classes=num_classes,
                         num_channels=num_channels)

    logits = convmixer_forward(x, params, patch_size=patch_size,
                               kernel_size=kernel_size, depth=depth)
    logits = jax.block_until_ready(logits)
    assert logits.shape == (batch, num_classes)
    assert bool(jnp.all(jnp.isfinite(logits)))
    print("KERNEL_OK")
</pallas_src>

<mosaic_0001>
module attributes {stable_mosaic.version = 11 : i64} {
  func.func @_matmul_gelu_bn_kernel(%arg0: i32, %arg1: i32, %arg2: i32, %arg3: memref<32x48xbf16, #tpu.memory_space<vmem>>, %arg4: memref<48x128xbf16, #tpu.memory_space<vmem>>, %arg5: memref<3x128xf32, #tpu.memory_space<vmem>>, %arg6: memref<32x128xbf16, #tpu.memory_space<vmem>>, %arg7: memref<32x128xf32, #tpu.memory_space<vmem>>) attributes {dimension_semantics = [#tpu.dimension_semantics<parallel>, #tpu.dimension_semantics<parallel>, #tpu.dimension_semantics<arbitrary>], iteration_bounds = array<i64: 1, 1, 1>, scalar_prefetch = 0 : i64, scratch_operands = 1 : i64, tpu.core_type = #tpu.core_type<tc>, window_params = [{transform_indices = @transform_0, window_bounds = array<i64: 32, 48>}, {transform_indices = @transform_1, window_bounds = array<i64: 48, 128>}, {transform_indices = @transform_2, window_bounds = array<i64: 3, 128>}, {transform_indices = @transform_3, window_bounds = array<i64: 32, 128>}]} {
    %c0_i32 = arith.constant 0 : i32
    %0 = arith.cmpi eq, %arg2, %c0_i32 : i32
    %1 = arith.extui %0 : i1 to i32
    %c0_i32_0 = arith.constant 0 : i32
    %2 = arith.cmpi ne, %1, %c0_i32_0 : i32
    scf.if %2 {
      %cst_10 = arith.constant 0.000000e+00 : f32
      %12 = vector.broadcast %cst_10 : f32 to vector<32x128xf32>
      %c0_11 = arith.constant 0 : index
      %c0_12 = arith.constant 0 : index
      %13 = vector.load %arg7[%c0_11, %c0_12] : memref<32x128xf32, #tpu.memory_space<vmem>>, vector<32x128xf32>
      tpu.vector_store %arg7[%c0_11, %c0_12], %12 {strides = array<i32>} : memref<32x128xf32, #tpu.memory_space<vmem>>, vector<32x128xf32>,
    } else {
    }
    %c0 = arith.constant 0 : index
    %c0_1 = arith.constant 0 : index
    %3 = vector.load %arg7[%c0, %c0_1] : memref<32x128xf32, #tpu.memory_space<vmem>>, vector<32x128xf32>
    %c0_2 = arith.constant 0 : index
    %c0_3 = arith.constant 0 : index
    %4 = vector.load %arg3[%c0_2, %c0_3] : memref<32x48xbf16, #tpu.memory_space<vmem>>, vector<32x48xbf16>
    %c0_4 = arith.constant 0 : index
    %c0_5 = arith.constant 0 : index
    %5 = vector.load %arg4[%c0_4, %c0_5] : memref<48x128xbf16, #tpu.memory_space<vmem>>, vector<48x128xbf16>
    %cst = arith.constant dense<0.000000e+00> : vector<32x128xf32>
    %6 = tpu.matmul %4, %5, %cst {dimension_numbers = #tpu.dot_dimension_numbers<[1], [0], [0], [1], [0, 0, 1, 1], [], []>} : vector<32x48xbf16>, vector<48x128xbf16>, vector<32x128xf32> -> vector<32x128xf32>
    %7 = arith.addf %3, %6 : vector<32x128xf32>
    %c0_6 = arith.constant 0 : index
    %c0_7 = arith.constant 0 : index
    %8 = vector.load %arg7[%c0_6, %c0_7] : memref<32x128xf32, #tpu.memory_space<vmem>>, vector<32x128xf32>
    tpu.vector_store %arg7[%c0_6, %c0_7], %7 {strides = array<i32>} : memref<32x128xf32, #tpu.memory_space<vmem>>, vector<32x128xf32>,
    %c0_i32_8 = arith.constant 0 : i32
    %9 = arith.cmpi eq, %arg2, %c0_i32_8 : i32
    %10 = arith.extui %9 : i1 to i32
    %c0_i32_9 = arith.constant 0 : i32
    %11 = arith.cmpi ne, %10, %c0_i32_9 : i32
    scf.if %11 {
      %c0_10 = arith.constant 0 : index
      %c0_11 = arith.constant 0 : index
      %12 = vector.load %arg5[%c0_10, %c0_11] : memref<3x128xf32, #tpu.memory_space<vmem>>, vector<3x128xf32>
      %c0_12 = arith.constant 0 : index
      %c0_13 = arith.constant 0 : index
      %13 = vector.load %arg7[%c0_12, %c0_13] : memref<32x128xf32, #tpu.memory_space<vmem>>, vector<32x128xf32>
      %14 = vector.extract_strided_slice %12 {offsets = [0, 0], sizes = [1, 128], strides = [1, 1]} : vector<3x128xf32> to vector<1x128xf32>
      %15 = vector.shape_cast %14 : vector<1x128xf32> to vector<128xf32>
      %16 = vector.shape_cast %15 : vector<128xf32> to vector<1x128xf32>
      %17 = vector.broadcast %16 : vector<1x128xf32> to vector<32x128xf32>
      %18 = arith.addf %13, %17 : vector<32x128xf32>
      %cst_14 = arith.constant 5.000000e-01 : f32
      %19 = vector.broadcast %cst_14 : f32 to vector<32x128xf32>
      %20 = arith.mulf %19, %18 : vector<32x128xf32>
      %cst_15 = arith.constant 0.707106769 : f32
      %21 = vector.broadcast %cst_15 : f32 to vector<32x128xf32>
      %22 = arith.mulf %18, %21 : vector<32x128xf32>
      %23 = math.erf %22 : vector<32x128xf32>
      %cst_16 = arith.constant 1.000000e+00 : f32
      %24 = vector.broadcast %cst_16 : f32 to vector<32x128xf32>
      %25 = arith.addf %24, %23 : vector<32x128xf32>
      %26 = arith.mulf %20, %25 : vector<32x128xf32>
      %27 = vector.extract_strided_slice %12 {offsets = [1, 0], sizes = [1, 128], strides = [1, 1]} : vector<3x128xf32> to vector<1x128xf32>
      %28 = vector.shape_cast %27 : vector<1x128xf32> to vector<128xf32>
      %29 = vector.shape_cast %28 : vector<128xf32> to vector<1x128xf32>
      %30 = vector.broadcast %29 : vector<1x128xf32> to vector<32x128xf32>
      %31 = arith.mulf %26, %30 : vector<32x128xf32>
      %32 = vector.extract_strided_slice %12 {offsets = [2, 0], sizes = [1, 128], strides = [1, 1]} : vector<3x128xf32> to vector<1x128xf32>
      %33 = vector.shape_cast %32 : vector<1x128xf32> to vector<128xf32>
      %34 = vector.shape_cast %33 : vector<128xf32> to vector<1x128xf32>
      %35 = vector.broadcast %34 : vector<1x128xf32> to vector<32x128xf32>
      %36 = arith.addf %31, %35 : vector<32x128xf32>
      %37 = arith.truncf %36 : vector<32x128xf32> to vector<32x128xbf16>
      %c0_17 = arith.constant 0 : index
      %c0_18 = arith.constant 0 : index
      %38 = vector.load %arg6[%c0_17, %c0_18] : memref<32x128xbf16, #tpu.memory_space<vmem>>, vector<32x128xbf16>
      tpu.vector_store %arg6[%c0_17, %c0_18], %37 {strides = array<i32>} : memref<32x128xbf16, #tpu.memory_space<vmem>>, vector<32x128xbf16>,
    } else {
    }
    return
  }
  func.func @transform_0(%arg0: i32, %arg1: i32, %arg2: i32) -> (i32, i32) {
    %c0_i32 = arith.constant 0 : i32
    return %arg0, %arg2 : i32, i32
  }
  func.func @transform_1(%arg0: i32, %arg1: i32, %arg2: i32) -> (i32, i32) {
    %c0_i32 = arith.constant 0 : i32
    return %arg2, %arg1 : i32, i32
  }
  func.func @transform_2(%arg0: i32, %arg1: i32, %arg2: i32) -> (i32, i32) {
    %c0_i32 = arith.constant 0 : i32
    %c0_i32_0 = arith.constant 0 : i32
    return %c0_i32, %arg1 : i32, i32
  }
  func.func @transform_3(%arg0: i32, %arg1: i32, %arg2: i32) -> (i32, i32) {
    %c0_i32 = arith.constant 0 : i32
    return %arg0, %arg1 : i32, i32
  }
}

</mosaic_0001>

<llo_original>
// kernel: tpu_custom_call.1
$region0: #{tpu_custom_call.1}
  #allocation0 [shape = 'u32[]', space=smem, size = 0x4, offset = 0x4, fixed_abs, tag = 'smem constant byte address 0x4 - core index']
  #allocation1 [shape = 'u32[144,128]{1,0:T(1,128)}', space=vmem, size = 0x12000, scoped, tag = 'internal scratch']
  #allocation2 [shape = 'f32[32,128]{1,0:T(8,128)}', space=vmem, size = 0x4000, scoped, tag = 'scratch operand']
  %s0 = inlined_call_operand.hbm [shape: bf16[32,48], index: 0, kind: input, shape index: {}]
  %s1 = inlined_call_operand.hbm [shape: bf16[48,128], index: 1, kind: input, shape index: {}]
  %s2 = inlined_call_operand.hbm [shape: f32[3,128], index: 2, kind: input, shape index: {}]
  %s3 = inlined_call_operand.hbm [shape: bf16[32,128], index: 3, kind: output, shape index: {}]
  %s4 = sld [smem:[#allocation0]]
  $region42: #{tpu_custom_call.1} parent=0
    _
  %s6 = ssub.s32 1, %s4
  %s7 = scalar_select 0, %s6, %s4
  $region1: #{tpu_custom_call.1} parent=0
    #allocation3 [shape = 'u8[8192]{0}', space=vmem, size = 0x2000, scoped, tag = 'input window, operand 0, single buffered']
    #allocation4 [shape = 's32[1]{0}', space=sflag, size = 0x4, scoped, tag = 'scoped memory for tpu_custom_call.1']
    #allocation5 [shape = 's32[1]{0}', space=sflag, size = 0x4, scoped, tag = 'scoped memory for tpu_custom_call.1']
    #allocation6 [shape = 'u8[12288]{0}', space=vmem, size = 0x3000, scoped, tag = 'input window, operand 1, single buffered']
    #allocation7 [shape = 's32[1]{0}', space=sflag, size = 0x4, scoped, tag = 'scoped memory for tpu_custom_call.1']
    #allocation8 [shape = 'u8[2048]{0}', space=vmem, size = 0x800, scoped, tag = 'input window, operand 2, single buffered']
    #allocation9 [shape = 'u8[8192]{0}', space=vmem, size = 0x2000, scoped, tag = 'output window, operand 0, single buffered']
    %8 = vsyncpa [#allocation4], 0
    %9 = vsyncpa [#allocation7], 0
    %10 = vsyncpa [#allocation5], 0
    // Predicated region
    $region2: #{tpu_custom_call.1} parent=1 // pred_check
      _
    $region3: #{tpu_custom_call.1} parent=1 // pred_check_branch
      %12 = sbr.rel (0) target = $region5
    $region4: #{tpu_custom_call.1} parent=1 // pred_region
      %s14 = ssub.s32 256, 256
      %15 = vsyncadd [#allocation4], %s14
      %s16 = sshll.u32 [#allocation3], 4
      %s17 = int_to_ptr.vmem [resolvable:$true] %s16
      %22 = dma.hbm_to_vmem [thread:$0]  %s0, 256, %s17, [#allocation4], 64, 64, 4
    $region5: #{tpu_custom_call.1} parent=1 // pred_fallthru
      _
    // Predicated region
    $region6: #{tpu_custom_call.1} parent=1 // pred_check
      _
    $region7: #{tpu_custom_call.1} parent=1 // pred_check_branch
      %24 = sbr.rel (0) target = $region9
    $region8: #{tpu_custom_call.1} parent=1 // pred_region
      %s26 = ssub.s32 384, 384
      %27 = vsyncadd [#allocation7], %s26
      %s28 = sshll.u32 [#allocation6], 4
      %s29 = int_to_ptr.vmem [resolvable:$true] %s28
      %34 = dma.hbm_to_vmem [thread:$0]  %s1, 384, %s29, [#allocation7], 64, 64, 4
    $region9: #{tpu_custom_call.1} parent=1 // pred_fallthru
      _
    // Predicated region
    $region10: #{tpu_custom_call.1} parent=1 // pred_check
      _
    $region11: #{tpu_custom_call.1} parent=1 // pred_check_branch
      %36 = sbr.rel (0) target = $region13
    $region12: #{tpu_custom_call.1} parent=1 // pred_region
      %s38 = ssub.s32 64, 64
      %39 = vsyncadd [#allocation7], %s38
      %s41 = sshll.u32 [#allocation8], 4
      %s42 = int_to_ptr.vmem [resolvable:$true] %s41
      %44 = dma.hbm_to_vmem [thread:$0]  %s2, 64, %s42, [#allocation7]
    $region13: #{tpu_custom_call.1} parent=1 // pred_fallthru
      _
    // Predicated region
    $region14: #{tpu_custom_call.1} parent=1 // pred_check
      _
    $region15: #{tpu_custom_call.1} parent=1 // pred_check_branch
      %46 = sbr.rel (0) target = $region17
    $region16: #{tpu_custom_call.1} parent=1 // pred_region
      %47 = dma.done [#allocation4], 256
    $region17: #{tpu_custom_call.1} parent=1 // pred_fallthru
      _
    // Predicated region
    $region18: #{tpu_custom_call.1} parent=1 // pred_check
      _
    $region19: #{tpu_custom_call.1} parent=1 // pred_check_branch
      %49 = sbr.rel (0) target = $region21
    $region20: #{tpu_custom_call.1} parent=1 // pred_region
      %50 = dma.done [#allocation7], 384
    $region21: #{tpu_custom_call.1} parent=1 // pred_fallthru
      _
    // Predicated region
    $region22: #{tpu_custom_call.1} parent=1 // pred_check
      _
    $region23: #{tpu_custom_call.1} parent=1 // pred_check_branch
      %52 = sbr.rel (0) target = $region25
    $region24: #{tpu_custom_call.1} parent=1 // pred_region
      %53 = dma.done [#allocation7], 64
    $region25: #{tpu_custom_call.1} parent=1 // pred_fallthru
      _
    %p55 = scmp.eq.s32.totalorder 0, 0
    // Predicated region
    $region26: #{tpu_custom_call.1} parent=1 // pred_check
      %p56 = pneg %p55
    $region27: #{tpu_custom_call.1} parent=1 // pred_check_branch
      %58 = sbr.rel (%p56) target = $region29
    $region28: #{tpu_custom_call.1} parent=1 // pred_region
      %59 = vst [vmem:[#allocation2] sm:$0xff] 0.0
      %60 = vst [vmem:[#allocation2 + $0x8] sm:$0xff] 0.0
      %61 = vst [vmem:[#allocation2 + $0x10] sm:$0xff] 0.0
      %62 = vst [vmem:[#allocation2 + $0x18] sm:$0xff] 0.0
    $region29: #{tpu_custom_call.1} parent=1 // pred_fallthru
      _
    %v63 = vld [vmem:[#allocation2] sm:$0xff]
    %v64 = vld [vmem:[#allocation2 + $0x8] sm:$0xff]
    %v65 = vld [vmem:[#allocation2 + $0x10] sm:$0xff]
    %v66 = vld [vmem:[#allocation2 + $0x18] sm:$0xff]
    %v67 = vld [vmem:[#allocation3] sm:$0xf]
    %v68 = vld [vmem:[#allocation3 + $0x4] sm:$0xf]
    %v69 = vld [vmem:[#allocation3 + $0x8] sm:$0xf]
    %v70 = vld [vmem:[#allocation3 + $0xc] sm:$0xf]
    %v71 = vld [vmem:[#allocation6] sm:$0xf]
    %v72 = vld [vmem:[#allocation6 + $0x4] sm:$0xf]
    %v73 = vld [vmem:[#allocation6 + $0x8] sm:$0xf]
    %v74 = vld [vmem:[#allocation6 + $0xc] sm:$0xf]
    %v75 = vld [vmem:[#allocation6 + $0x10] sm:$0xf]
    %v76 = vld [vmem:[#allocation6 + $0x14] sm:$0xf]
    %v81 = vunpack.c.l.b16 %v67
    %v82 = vunpack.c.l.b16 %v68
    %v83 = vunpack.c.l.b16 %v69
    %v84 = vunpack.c.l.b16 %v70
    %v85 = vpack.c.b16 %v82, %v81
    %v86 = vpack.c.b16 %v84, %v83
    %v93 = vunpack.c.l.b16 %v71
    %v94 = vunpack.c.l.b16 %v72
    %v95 = vunpack.c.l.b16 %v73
    %v96 = vunpack.c.l.b16 %v74
    %v97 = vunpack.c.l.b16 %v75
    %v98 = vunpack.c.l.b16 %v76
    %v99 = vpack.c.b16 %v94, %v93
    %v100 = vpack.c.b16 %v96, %v95
    %v101 = vpack.c.b16 %v98, %v97
    %vm105 = vcmask 392192
    %v107 = vsel %vm105, %v85, 0
    %v110 = vsel %vm105, %v86, 0
    %112 = vmatprep.subr.bf16.mxu0 0
    %113 = vmatpush1.bf16.msra.mxu0 0
    %114 = vmatprep.subr.bf16.mxu0 0
    %115 = vmatpush1.bf16.msra.mxu0 0
    %116 = vmatprep.subr.bf16.mxu0 0
    %117 = vmatpush1.bf16.msra.mxu0 0
    %118 = vmatprep.subr.bf16.mxu0 0
    %119 = vmatpush1.bf16.msra.mxu0 0
    %120 = vmatprep.subr.bf16.mxu0 0
    %121 = vmatpush1.bf16.msra.mxu0 0
    %122 = vmatprep.subr.bf16.mxu0 0
    %123 = vmatpush1.bf16.msra.mxu0 %v101
    %124 = vmatprep.subr.bf16.mxu0 0
    %125 = vmatpush1.bf16.msra.mxu0 %v100
    %126 = vmatprep.subr.bf16.mxu0 0
    %127 = vmatpush1.bf16.msra.mxu0 %v99
    %128 = vmatprep.subr.bf16.mxu0 0
    %129 = vmatpush2.bf16.msra.mxu0 0
    %130 = vmatprep.subr.bf16.mxu0 0
    %131 = vmatpush2.bf16.msra.mxu0 0
    %132 = vmatprep.subr.bf16.mxu0 0
    %133 = vmatpush2.bf16.msra.mxu0 0
    %134 = vmatprep.subr.bf16.mxu0 0
    %135 = vmatpush2.bf16.msra.mxu0 0
    %136 = vmatprep.subr.bf16.mxu0 0
    %137 = vmatpush2.bf16.msra.mxu0 0
    %138 = vmatprep.subr.bf16.mxu0 0
    %139 = vmatpush2.bf16.msra.mxu0 0
    %140 = vmatprep.subr.bf16.mxu0 0
    %141 = vmatpush2.bf16.msra.mxu0 0
    %142 = vmatprep.subr.bf16.mxu0 0
    %143 = vmatpush2.bf16.msra.mxu0 0
    %144 = vmatprep.mubr.bf16.mxu0 0
    %145 = vmatmul.mubr.bf16.gmra.mxu0 %v107
    %v146 = vpop.f32.mrf.mxu0
    %v147 = vadd.f32 0.0, %v146
    %v148 = vpop.f32.mrf.mxu0
    %v149 = vpop.f32.mrf.mxu0
    %v150 = vadd.f32 0.0, %v149
    %v151 = vpop.f32.mrf.mxu0
    %152 = vmatprep.mubr.bf16.mxu0 0
    %153 = vmatmul.mubr.bf16.gmra.mxu0 %v110
    %v154 = vpop.f32.mrf.mxu0
    %v155 = vadd.f32 0.0, %v154
    %v156 = vpop.f32.mrf.mxu0
    %v157 = vpop.f32.mrf.mxu0
    %v158 = vadd.f32 0.0, %v157
    %v159 = vpop.f32.mrf.mxu0
    %160 = vdwg.mxu0
    %v161 = vadd.f32 %v63, %v147
    %v162 = vadd.f32 %v64, %v150
    %v163 = vadd.f32 %v65, %v155
    %v164 = vadd.f32 %v66, %v158
    %165 = vst [vmem:[#allocation2] sm:$0xff] %v161
    %166 = vst [vmem:[#allocation2 + $0x8] sm:$0xff] %v162
    %167 = vst [vmem:[#allocation2 + $0x10] sm:$0xff] %v163
    %168 = vst [vmem:[#allocation2 + $0x18] sm:$0xff] %v164
    // Predicated region
    $region30: #{tpu_custom_call.1} parent=1 // pred_check
      %p169 = pneg %p55
    $region31: #{tpu_custom_call.1} parent=1 // pred_check_branch
      %171 = sbr.rel (%p169) target = $region33
    $region32: #{tpu_custom_call.1} parent=1 // pred_region
      %v172 = vld [vmem:[#allocation8] sm:$0x7]
      %v173 = vld [vmem:[#allocation2] sm:$0xff]
      %v174 = vld [vmem:[#allocation2 + $0x8] sm:$0xff]
      %v175 = vld [vmem:[#allocation2 + $0x10] sm:$0xff]
      %v176 = vld [vmem:[#allocation2 + $0x18] sm:$0xff]
      %v177 = vlaneseq
      %v178 = vshrl.u32 %v177, 7
      %v179 = vsub.s32 0, %v178
      %v180 = vrot.slane %v172, %v179
      %v181 = vadd.f32 %v173, %v180
      %v182 = vadd.f32 %v174, %v180
      %v183 = vadd.f32 %v175, %v180
      %v184 = vadd.f32 %v176, %v180
      %v185 = vmul.f32 %v181, 0.5
      %v186 = vmul.f32 %v182, 0.5
      %v187 = vmul.f32 %v183, 0.5
      %v188 = vmul.f32 %v184, 0.5
      %v189 = vmul.f32 %v181, 0.70710677
      %v190 = vmul.f32 %v182, 0.70710677
      %v191 = vmul.f32 %v183, 0.70710677
      %v192 = vmul.f32 %v184, 0.70710677
      %v193 = verf.f32.pop %v189
      %v194 = verf.f32.pop %v190
      %v195 = verf.f32.pop %v191
      %v196 = verf.f32.pop %v192
      %v197 = vadd.f32 %v193, 1.0
      %v198 = vadd.f32 %v194, 1.0
      %v199 = vadd.f32 %v195, 1.0
      %v200 = vadd.f32 %v196, 1.0
      %v201 = vmul.f32 %v185, %v197
      %v202 = vmul.f32 %v186, %v198
      %v203 = vmul.f32 %v187, %v199
      %v204 = vmul.f32 %v188, %v200
      %v205 = vlaneseq
      %v206 = vshrl.u32 %v205, 7
      %v207 = vsub.s32 1, %v206
      %v208 = vrot.slane %v172, %v207
      %v209 = vmul.f32 %v201, %v208
      %v210 = vmul.f32 %v202, %v208
      %v211 = vmul.f32 %v203, %v208
      %v212 = vmul.f32 %v204, %v208
      %v213 = vlaneseq
      %v214 = vshrl.u32 %v213, 7
      %v215 = vsub.s32 2, %v214
      %v216 = vrot.slane %v172, %v215
      %v217 = vadd.f32 %v209, %v216
      %v218 = vadd.f32 %v210, %v216
      %v219 = vadd.f32 %v211, %v216
      %v220 = vadd.f32 %v212, %v216
      %v221 = vpack.c.bf16 %v218, %v217
      %v222 = vpack.c.bf16 %v220, %v219
      %v225 = vunpack.c.l.b16 %v221
      %v226 = vunpack.c.h.b16 %v221
      %v227 = vunpack.c.l.b16 %v222
      %v228 = vunpack.c.h.b16 %v222
      %v229 = vpack.c.b16 %v225, %v225
      %v230 = vpack.c.b16 %v226, %v226
      %v231 = vpack.c.b16 %v227, %v227
      %v232 = vpack.c.b16 %v228, %v228
      %237 = vst [vmem:[#allocation9] sm:$0xf] %v229
      %238 = vst [vmem:[#allocation9 + $0x4] sm:$0xf] %v230
      %239 = vst [vmem:[#allocation9 + $0x8] sm:$0xf] %v231
      %240 = vst [vmem:[#allocation9 + $0xc] sm:$0xf] %v232
    $region33: #{tpu_custom_call.1} parent=1 // pred_fallthru
      _
    // Predicated region
    $region34: #{tpu_custom_call.1} parent=1 // pred_check
      _
    $region35: #{tpu_custom_call.1} parent=1 // pred_check_branch
      %242 = sbr.rel (0) target = $region37
    $region36: #{tpu_custom_call.1} parent=1 // pred_region
      %s244 = ssub.s32 256, 256
      %245 = vsyncadd [#allocation5], %s244
      %s246 = sshll.u32 [#allocation9], 4
      %s247 = int_to_ptr.vmem [resolvable:$true] %s246
      %252 = dma.vmem_to_hbm [thread:$0]  %s247, 256, %s3, [#allocation5], 64, 64, 4
    $region37: #{tpu_custom_call.1} parent=1 // pred_fallthru
      _
    // Predicated region
    $region38: #{tpu_custom_call.1} parent=1 // pred_check
      _
    $region39: #{tpu_custom_call.1} parent=1 // pred_check_branch
      %254 = sbr.rel (0) target = $region41
    $region40: #{tpu_custom_call.1} parent=1 // pred_region
      %255 = dma.done [#allocation5], 256
    $region41: #{tpu_custom_call.1} parent=1 // pred_fallthru
      _
    %256 = vsyncpa [#allocation4], 1
    %257 = vsyncpa [#allocation7], 1
    %258 = vsyncpa [#allocation5], 1

</llo_original>
